<compile_context>
chip_gen: v5e
topology: v5e:2x2
jax: 0.10.0
libtpu: 0.0.40
codegen_flags: <defaults>
</compile_context>

<pallas_src>
import math

import jax
import jax.numpy as jnp
from jax.experimental import pallas as pl
from jax.experimental.pallas import tpu as pltpu


def _pair(v):
    return (v, v) if isinstance(v, int) else tuple(v)


# --------------------------- VMEM budget helpers -----------------------------

def _round_up(v, m):
    return ((v + m - 1) // m) * m


def _buffer_bytes(shape, dtype):
    """(sublane, 128)-rounded VMEM footprint of one buffer holding `shape`."""
    itemsize = jnp.dtype(dtype).itemsize
    sublane = {4: 8, 2: 16, 1: 32}.get(itemsize, 8)
    dims = [int(d) for d in shape]
    if len(dims) == 1:
        dims = [1] + dims
    lead = 1
    for d in dims[:-2]:
        lead *= d
    rows = _round_up(dims[-2], sublane)
    cols = _round_up(dims[-1], 128)
    return lead * rows * cols * itemsize


def _vmem_limit_bytes(per_step_buffers, scratch_buffers):
    """Explicit VMEM limit: double-buffered pipelined blocks + scratch + slack."""
    est = 2 * sum(_buffer_bytes(s, d) for s, d in per_step_buffers)   # 2x buffers
    est += sum(_buffer_bytes(s, d) for s, d in scratch_buffers)
    want = max(4 * est, 16 << 20)                     # generous slack, >= 16 MiB
    try:                                              # cap by physical VMEM
        cap = int(pltpu.get_tpu_info().vmem_capacity_bytes) // 2
    except Exception:
        cap = 32 << 20
    return int(min(want, max(cap, 16 << 20)))


# ------------------------------- forward pass --------------------------------

def conv2d_usv_forward(x, U, S_hat, V, bias, kernel_size, padding, stride,
                       compute_dtype=jnp.bfloat16, out_dtype=None):
    """Low-rank USV conv forward. x: (B, Cin, H, W) NCHW -> (B, Cout, oh, ow)."""
    kh, kw = _pair(kernel_size)
    ph, pw = _pair(padding)
    sh, sw = _pair(stride)
    B, Cin, H, W = x.shape
    Cout, rank = U.shape
    out_dtype = x.dtype if out_dtype is None else out_dtype

    out_h = (H + 2 * ph - kh) // sh + 1
    out_w = (W + 2 * pw - kw) // sw + 1
    Hp, Wp = H + 2 * ph, W + 2 * pw

    # Zero-pad and relayout to (B, Hp, Cin, Wp) in one fused XLA copy so each
    # (output-row, kernel-row) input slab is a plain BlockSpec block whose last
    # two dims (Cin, Wp) equal the full array dims (satisfies the (8,128) rule).
    xp = jnp.transpose(
        jnp.pad(x.astype(compute_dtype),
                ((0, 0), (0, 0), (ph, ph), (pw, pw))),
        (0, 2, 1, 3))                                           # (B, Hp, Cin, Wp)

    # Low-rank weights in kernel-friendly layouts (all tiny, VMEM-resident).
    US = (U @ S_hat).astype(jnp.float32)                        # (Cout, r)
    #   V: (M, r) with M ordered (c, ki, kj)  ->  Vt: (kh*kw, r, Cin)
    Vt = jnp.transpose(V.T.reshape(rank, Cin, kh, kw), (2, 3, 0, 1))
    Vt = Vt.reshape(kh * kw, rank, Cin).astype(compute_dtype)
    bias_col = bias.reshape(Cout, 1).astype(jnp.float32)

    def kernel(x_ref, vt_ref, us_ref, b_ref, o_ref, acc_ref):
        # x_ref  : (Cin, Wp)        one zero-padded input row (bf16)
        # vt_ref : (kh*kw, r, Cin)  resident V^T slabs (bf16)
        # us_ref : (Cout, r)        resident U @ S_hat (f32)
        # b_ref  : (Cout, 1)        resident bias (f32)
        # o_ref  : (Cout, out_w)    one output row
        # acc_ref: (r, out_w)       f32 accumulator A = V^T X for this row
        ki = pl.program_id(2)

        @pl.when(ki == 0)
        def _init():
            acc_ref[...] = jnp.zeros_like(acc_ref)

        for kj in range(kw):                          # static, small unrolled loop
            sl = pl.ds(kj, out_w) if sw == 1 else pl.ds(kj, out_w, stride=sw)
            xk = x_ref[:, sl]                         # (Cin, out_w) bf16
            acc_ref[...] += jnp.dot(vt_ref[ki * kw + kj], xk,
                                    preferred_element_type=jnp.float32)

        @pl.when(ki == kh - 1)
        def _finalize():
            out = jnp.dot(us_ref[...], acc_ref[...],
                          preferred_element_type=jnp.float32,
                          precision=jax.lax.Precision.HIGHEST)
            o_ref[...] = (out + b_ref[...]).astype(o_ref.dtype)

    vmem_limit = _vmem_limit_bytes(
        per_step_buffers=[((Cin, Wp), compute_dtype),
                          ((Cout, out_w), out_dtype),
                          ((kh * kw, rank, Cin), compute_dtype),
                          ((Cout, rank), jnp.float32),
                          ((Cout, 1), jnp.float32)],
        scratch_buffers=[((rank, out_w), jnp.float32)])

    out_rows = pl.pallas_call(
        kernel,
        out_shape=jax.ShapeDtypeStruct((B, out_h, Cout, out_w), out_dtype),
        grid_spec=pltpu.PrefetchScalarGridSpec(
            num_scalar_prefetch=0,
            grid=(B, out_h, kh),
            in_specs=[
                # One padded input row per (b, i, ki): fused im2col row fetch.
                pl.BlockSpec((pl.Squeezed(), pl.Squeezed(), Cin, Wp),
                             lambda b, i, ki: (b, i * sh + ki, 0, 0)),
                # Resident low-rank weights (constant index maps, tiny).
                pl.BlockSpec((kh * kw, rank, Cin), lambda b, i, ki: (0, 0, 0)),
                pl.BlockSpec((Cout, rank), lambda b, i, ki: (0, 0)),
                pl.BlockSpec((Cout, 1), lambda b, i, ki: (0, 0)),
            ],
            out_specs=pl.BlockSpec((pl.Squeezed(), pl.Squeezed(), Cout, out_w),
                                   lambda b, i, ki: (b, i, 0, 0)),
            scratch_shapes=[pltpu.VMEM((rank, out_w), jnp.float32)],
        ),
        compiler_params=pltpu.CompilerParams(
            dimension_semantics=("parallel", "parallel", "arbitrary"),
            vmem_limit_bytes=vmem_limit),
    )(xp, Vt, US, bias_col)

    # (B, out_h, Cout, out_w) -> NCHW (B, Cout, out_h, out_w).
    return jnp.transpose(out_rows, (0, 2, 1, 3))


# ----------------------- reference im2col (checks only) ----------------------

def _unfold_reference(x, kernel_size, padding, stride):
    """Plain-JAX im2col matching torch.nn.functional.unfold (dilation=1).

    Used ONLY for the correctness checks below; the kernel path never
    materializes this tensor.
    """
    B, C, H, W = x.shape
    kh, kw = kernel_size
    ph, pw = padding
    sh, sw = stride
    xp = jnp.pad(x, ((0, 0), (0, 0), (ph, ph), (pw, pw)))
    out_h = (H + 2 * ph - kh) // sh + 1
    out_w = (W + 2 * pw - kw) // sw + 1
    L = out_h * out_w
    cols = []
    for i in range(kh):
        for j in range(kw):
            patch = xp[:, :, i:i + sh * out_h:sh, j:j + sw * out_w:sw]
            cols.append(patch.reshape(B, C, L))
    col = jnp.stack(cols, axis=2)                        # (B, C, kh*kw, L)
    return col.reshape(B, C * kh * kw, L), out_h, out_w


# ------------------------ deterministic parameter init -----------------------

def init_usv_params(key, in_channels, out_channels, kernel_size, rank):
    kh, kw = kernel_size
    m = in_channels * kh * kw
    n = out_channels
    k_s, k_u, k_v, k_b = jax.random.split(key, 4)

    # S_hat: diag of singular values of diag(|randn(rank)|) == sorted |randn| desc.
    s_raw = jnp.abs(jax.random.normal(k_s, (rank,), dtype=jnp.float32))
    s_ordered = jnp.sort(s_raw)[::-1]
    S_hat = jnp.diag(s_ordered)

    # U, V: orthonormal columns from SVD of Gaussian matrices.
    U_full, _, _ = jnp.linalg.svd(jax.random.normal(k_u, (n, rank), dtype=jnp.float32),
                                  full_matrices=True)
    V_full, _, _ = jnp.linalg.svd(jax.random.normal(k_v, (m, rank), dtype=jnp.float32),
                                  full_matrices=True)
    U = U_full[:, :rank]
    V = V_full[:, :rank]

    # bias ~ Uniform(-1/sqrt(fan_in), 1/sqrt(fan_in)), fan_in = Cin*kh*kw.
    bound = 1.0 / math.sqrt(m)
    bias = jax.random.uniform(k_b, (n,), minval=-bound, maxval=bound,
                              dtype=jnp.float32)
    return U, S_hat, V, bias


# ----------------------------------- main ------------------------------------

if __name__ == "__main__":
    # Module config (small, consistent with the PyTorch __init__ / forward).
    in_channels = 4
    out_channels = 8
    kernel_size = (3, 3)
    padding = (1, 1)
    stride = (1, 1)
    rank = 4                     # <= rmax = min(Cout, Cin*kh*kw) = 8

    key = jax.random.PRNGKey(0)
    k_param, k_x = jax.random.split(key)
    U, S_hat, V, bias = init_usv_params(k_param, in_channels, out_channels,
                                        kernel_size, rank)

    x = jax.random.normal(k_x, (2, in_channels, 16, 16), dtype=jnp.float32)

    out = conv2d_usv_forward(x, U, S_hat, V, bias, kernel_size, padding, stride)
    out = jax.block_until_ready(out)

    # --- sanity checks against plain-JAX references --------------------------
    x_unf, oh, ow = _unfold_reference(x, kernel_size, padding, stride)  # (B,M,L)
    US = U @ S_hat                                                      # (Cout,r)
    hp = jax.lax.Precision.HIGHEST

    # Tight check: same bf16-rounded operands / f32 accumulation as the kernel.
    Vb = V.astype(jnp.bfloat16).astype(jnp.float32)
    xb = x_unf.astype(jnp.bfloat16).astype(jnp.float32)
    A = jnp.einsum('mr,bml->brl', Vb, xb, precision=hp)
    ref_bf = jnp.einsum('or,brl->bol', US, A, precision=hp) + bias[None, :, None]
    ref_bf = ref_bf.reshape(x.shape[0], out_channels, oh, ow)

    # Loose check: exact f32 low-rank chain (overall PyTorch semantics).
    ref_f32 = jnp.einsum('om,bml->bol', US @ V.T, x_unf,
                         precision=hp) + bias[None, :, None]
    ref_f32 = ref_f32.reshape(x.shape[0], out_channels, oh, ow)

    assert out.shape == (2, out_channels, 16, 16)
    assert jnp.allclose(out, ref_bf, atol=5e-3, rtol=5e-3), \
        float(jnp.max(jnp.abs(out - ref_bf)))
    assert jnp.allclose(out, ref_f32, atol=6e-2, rtol=6e-2), \
        float(jnp.max(jnp.abs(out - ref_f32)))

    print("KERNEL_OK")
</pallas_src>

<mosaic_0001>
module attributes {stable_mosaic.version = 11 : i64} {
  func.func @kernel(%arg0: i32, %arg1: i32, %arg2: i32, %arg3: memref<1x1x4x18xbf16, #tpu.memory_space<vmem>>, %arg4: memref<9x4x4xbf16, #tpu.memory_space<vmem>>, %arg5: memref<8x4xf32, #tpu.memory_space<vmem>>, %arg6: memref<8x1xf32, #tpu.memory_space<vmem>>, %arg7: memref<1x1x8x16xf32, #tpu.memory_space<vmem>>, %arg8: memref<4x16xf32, #tpu.memory_space<vmem>>) attributes {dimension_semantics = [#tpu.dimension_semantics<parallel>, #tpu.dimension_semantics<parallel>, #tpu.dimension_semantics<arbitrary>], iteration_bounds = array<i64: 2, 16, 3>, scalar_prefetch = 0 : i64, scratch_operands = 1 : i64, tpu.core_type = #tpu.core_type<tc>, window_params = [{transform_indices = @transform_0, window_bounds = array<i64: 1, 1, 4, 18>}, {pipeline_mode = #tpu.pipeline_mode<synchronous>, transform_indices = @transform_1, window_bounds = array<i64: 9, 4, 4>}, {pipeline_mode = #tpu.pipeline_mode<synchronous>, transform_indices = @transform_2, window_bounds = array<i64: 8, 4>}, {pipeline_mode = #tpu.pipeline_mode<synchronous>, transform_indices = @transform_3, window_bounds = array<i64: 8, 1>}, {transform_indices = @transform_4, window_bounds = array<i64: 1, 1, 8, 16>}]} {
    %c0_i32 = arith.constant 0 : i32
    %0 = arith.cmpi eq, %arg2, %c0_i32 : i32
    %1 = arith.extui %0 : i1 to i32
    %c0_i32_0 = arith.constant 0 : i32
    %2 = arith.cmpi ne, %1, %c0_i32_0 : i32
    scf.if %2 {
      %cst_35 = arith.constant 0.000000e+00 : f32
      %39 = vector.broadcast %cst_35 : f32 to vector<4x16xf32>
      %c0_36 = arith.constant 0 : index
      %c0_37 = arith.constant 0 : index
      %40 = vector.load %arg8[%c0_36, %c0_37] : memref<4x16xf32, #tpu.memory_space<vmem>>, vector<4x16xf32>
      tpu.vector_store %arg8[%c0_36, %c0_37], %39 {strides = array<i32>} : memref<4x16xf32, #tpu.memory_space<vmem>>, vector<4x16xf32>,
    } else {
    }
    %c0 = arith.constant 0 : index
    %c0_1 = arith.constant 0 : index
    %c0_2 = arith.constant 0 : index
    %c0_3 = arith.constant 0 : index
    %3 = vector.load %arg3[%c0, %c0_1, %c0_2, %c0_3] : memref<1x1x4x18xbf16, #tpu.memory_space<vmem>>, vector<1x1x4x16xbf16>
    %4 = vector.shape_cast %3 : vector<1x1x4x16xbf16> to vector<4x16xbf16>
    %c0_4 = arith.constant 0 : index
    %c0_5 = arith.constant 0 : index
    %5 = vector.load %arg8[%c0_4, %c0_5] : memref<4x16xf32, #tpu.memory_space<vmem>>, vector<4x16xf32>
    %c3_i32 = arith.constant 3 : i32
    %6 = arith.muli %arg2, %c3_i32 : i32
    %c0_i32_6 = arith.constant 0 : i32
    %7 = arith.addi %6, %c0_i32_6 : i32
    %8 = arith.index_cast %7 : i32 to index
    %c0_7 = arith.constant 0 : index
    %c0_8 = arith.constant 0 : index
    %9 = vector.load %arg4[%8, %c0_7, %c0_8] : memref<9x4x4xbf16, #tpu.memory_space<vmem>>, vector<1x4x4xbf16>
    %10 = vector.shape_cast %9 : vector<1x4x4xbf16> to vector<4x4xbf16>
    %cst = arith.constant dense<0.000000e+00> : vector<4x16xf32>
    %11 = tpu.matmul %10, %4, %cst {dimension_numbers = #tpu.dot_dimension_numbers<[1], [0], [0], [1], [0, 0, 1, 1], [], []>} : vector<4x4xbf16>, vector<4x16xbf16>, vector<4x16xf32> -> vector<4x16xf32>
    %12 = arith.addf %5, %11 : vector<4x16xf32>
    %c0_9 = arith.constant 0 : index
    %c0_10 = arith.constant 0 : index
    %13 = vector.load %arg8[%c0_9, %c0_10] : memref<4x16xf32, #tpu.memory_space<vmem>>, vector<4x16xf32>
    tpu.vector_store %arg8[%c0_9, %c0_10], %12 {strides = array<i32>} : memref<4x16xf32, #tpu.memory_space<vmem>>, vector<4x16xf32>,
    %c0_11 = arith.constant 0 : index
    %c0_12 = arith.constant 0 : index
    %c0_13 = arith.constant 0 : index
    %c1 = arith.constant 1 : index
    %14 = vector.load %arg3[%c0_11, %c0_12, %c0_13, %c1] : memref<1x1x4x18xbf16, #tpu.memory_space<vmem>>, vector<1x1x4x16xbf16>
    %15 = vector.shape_cast %14 : vector<1x1x4x16xbf16> to vector<4x16xbf16>
    %c0_14 = arith.constant 0 : index
    %c0_15 = arith.constant 0 : index
    %16 = vector.load %arg8[%c0_14, %c0_15] : memref<4x16xf32, #tpu.memory_space<vmem>>, vector<4x16xf32>
    %c3_i32_16 = arith.constant 3 : i32
    %17 = arith.muli %arg2, %c3_i32_16 : i32
    %c1_i32 = arith.constant 1 : i32
    %18 = arith.addi %17, %c1_i32 : i32
    %19 = arith.index_cast %18 : i32 to index
    %c0_17 = arith.constant 0 : index
    %c0_18 = arith.constant 0 : index
    %20 = vector.load %arg4[%19, %c0_17, %c0_18] : memref<9x4x4xbf16, #tpu.memory_space<vmem>>, vector<1x4x4xbf16>
    %21 = vector.shape_cast %20 : vector<1x4x4xbf16> to vector<4x4xbf16>
    %cst_19 = arith.constant dense<0.000000e+00> : vector<4x16xf32>
    %22 = tpu.matmul %21, %15, %cst_19 {dimension_numbers = #tpu.dot_dimension_numbers<[1], [0], [0], [1], [0, 0, 1, 1], [], []>} : vector<4x4xbf16>, vector<4x16xbf16>, vector<4x16xf32> -> vector<4x16xf32>
    %23 = arith.addf %16, %22 : vector<4x16xf32>
    %c0_20 = arith.constant 0 : index
    %c0_21 = arith.constant 0 : index
    %24 = vector.load %arg8[%c0_20, %c0_21] : memref<4x16xf32, #tpu.memory_space<vmem>>, vector<4x16xf32>
    tpu.vector_store %arg8[%c0_20, %c0_21], %23 {strides = array<i32>} : memref<4x16xf32, #tpu.memory_space<vmem>>, vector<4x16xf32>,
    %c0_22 = arith.constant 0 : index
    %c0_23 = arith.constant 0 : index
    %c0_24 = arith.constant 0 : index
    %c2 = arith.constant 2 : index
    %25 = vector.load %arg3[%c0_22, %c0_23, %c0_24, %c2] : memref<1x1x4x18xbf16, #tpu.memory_space<vmem>>, vector<1x1x4x16xbf16>
    %26 = vector.shape_cast %25 : vector<1x1x4x16xbf16> to vector<4x16xbf16>
    %c0_25 = arith.constant 0 : index
    %c0_26 = arith.constant 0 : index
    %27 = vector.load %arg8[%c0_25, %c0_26] : memref<4x16xf32, #tpu.memory_space<vmem>>, vector<4x16xf32>
    %c3_i32_27 = arith.constant 3 : i32
    %28 = arith.muli %arg2, %c3_i32_27 : i32
    %c2_i32 = arith.constant 2 : i32
    %29 = arith.addi %28, %c2_i32 : i32
    %30 = arith.index_cast %29 : i32 to index
    %c0_28 = arith.constant 0 : index
    %c0_29 = arith.constant 0 : index
    %31 = vector.load %arg4[%30, %c0_28, %c0_29] : memref<9x4x4xbf16, #tpu.memory_space<vmem>>, vector<1x4x4xbf16>
    %32 = vector.shape_cast %31 : vector<1x4x4xbf16> to vector<4x4xbf16>
    %cst_30 = arith.constant dense<0.000000e+00> : vector<4x16xf32>
    %33 = tpu.matmul %32, %26, %cst_30 {dimension_numbers = #tpu.dot_dimension_numbers<[1], [0], [0], [1], [0, 0, 1, 1], [], []>} : vector<4x4xbf16>, vector<4x16xbf16>, vector<4x16xf32> -> vector<4x16xf32>
    %34 = arith.addf %27, %33 : vector<4x16xf32>
    %c0_31 = arith.constant 0 : index
    %c0_32 = arith.constant 0 : index
    %35 = vector.load %arg8[%c0_31, %c0_32] : memref<4x16xf32, #tpu.memory_space<vmem>>, vector<4x16xf32>
    tpu.vector_store %arg8[%c0_31, %c0_32], %34 {strides = array<i32>} : memref<4x16xf32, #tpu.memory_space<vmem>>, vector<4x16xf32>,
    %c2_i32_33 = arith.constant 2 : i32
    %36 = arith.cmpi eq, %arg2, %c2_i32_33 : i32
    %37 = arith.extui %36 : i1 to i32
    %c0_i32_34 = arith.constant 0 : i32
    %38 = arith.cmpi ne, %37, %c0_i32_34 : i32
    scf.if %38 {
      %c0_35 = arith.constant 0 : index
      %c0_36 = arith.constant 0 : index
      %39 = vector.load %arg5[%c0_35, %c0_36] : memref<8x4xf32, #tpu.memory_space<vmem>>, vector<8x4xf32>
      %c0_37 = arith.constant 0 : index
      %c0_38 = arith.constant 0 : index
      %40 = vector.load %arg8[%c0_37, %c0_38] : memref<4x16xf32, #tpu.memory_space<vmem>>, vector<4x16xf32>
      %cst_39 = arith.constant dense<0.000000e+00> : vector<8x16xf32>
      %41 = tpu.matmul %39, %40, %cst_39 {dimension_numbers = #tpu.dot_dimension_numbers<[1], [0], [0], [1], [0, 0, 1, 1], [], []>, precision = #tpu.contract_precision<fp32>} : vector<8x4xf32>, vector<4x16xf32>, vector<8x16xf32> -> vector<8x16xf32>
      %c0_40 = arith.constant 0 : index
      %c0_41 = arith.constant 0 : index
      %42 = vector.load %arg6[%c0_40, %c0_41] : memref<8x1xf32, #tpu.memory_space<vmem>>, vector<8x1xf32>
      %43 = vector.broadcast %42 : vector<8x1xf32> to vector<8x16xf32>
      %44 = arith.addf %41, %43 : vector<8x16xf32>
      %c0_42 = arith.constant 0 : index
      %c0_43 = arith.constant 0 : index
      %c0_44 = arith.constant 0 : index
      %c0_45 = arith.constant 0 : index
      %45 = vector.load %arg7[%c0_42, %c0_43, %c0_44, %c0_45] : memref<1x1x8x16xf32, #tpu.memory_space<vmem>>, vector<1x1x8x16xf32>
      %46 = vector.shape_cast %45 : vector<1x1x8x16xf32> to vector<8x16xf32>
      %47 = vector.shape_cast %44 : vector<8x16xf32> to vector<1x1x8x16xf32>
      tpu.vector_store %arg7[%c0_42, %c0_43, %c0_44, %c0_45], %47 {strides = array<i32>} : memref<1x1x8x16xf32, #tpu.memory_space<vmem>>, vector<1x1x8x16xf32>,
    } else {
    }
    return
  }
  func.func @transform_0(%arg0: i32, %arg1: i32, %arg2: i32) -> (i32, i32, i32, i32) {
    %c1_i32 = arith.constant 1 : i32
    %0 = arith.muli %arg1, %c1_i32 : i32
    %1 = arith.addi %0, %arg2 : i32
    %c0_i32 = arith.constant 0 : i32
    %c0_i32_0 = arith.constant 0 : i32
    %c0_i32_1 = arith.constant 0 : i32
    return %arg0, %1, %c0_i32, %c0_i32_0 : i32, i32, i32, i32
  }
  func.func @transform_1(%arg0: i32, %arg1: i32, %arg2: i32) -> (i32, i32, i32) {
    %c0_i32 = arith.constant 0 : i32
    %c0_i32_0 = arith.constant 0 : i32
    %c0_i32_1 = arith.constant 0 : i32
    %c0_i32_2 = arith.constant 0 : i32
    return %c0_i32, %c0_i32_0, %c0_i32_1 : i32, i32, i32
  }
  func.func @transform_2(%arg0: i32, %arg1: i32, %arg2: i32) -> (i32, i32) {
    %c0_i32 = arith.constant 0 : i32
    %c0_i32_0 = arith.constant 0 : i32
    %c0_i32_1 = arith.constant 0 : i32
    return %c0_i32, %c0_i32_0 : i32, i32
  }
  func.func @transform_3(%arg0: i32, %arg1: i32, %arg2: i32) -> (i32, i32) {
    %c0_i32 = arith.constant 0 : i32
    %c0_i32_0 = arith.constant 0 : i32
    %c0_i32_1 = arith.constant 0 : i32
    return %c0_i32, %c0_i32_0 : i32, i32
  }
  func.func @transform_4(%arg0: i32, %arg1: i32, %arg2: i32) -> (i32, i32, i32, i32) {
    %c0_i32 = arith.constant 0 : i32
    %c0_i32_0 = arith.constant 0 : i32
    %c0_i32_1 = arith.constant 0 : i32
    return %arg0, %arg1, %c0_i32, %c0_i32_0 : i32, i32, i32, i32
  }
}

</mosaic_0001>

<llo_original>
// kernel: tpu_custom_call.1
$region0: #{tpu_custom_call.1}
  #allocation0 [shape = 'u32[]', space=smem, size = 0x4, offset = 0x4, fixed_abs, tag = 'smem constant byte address 0x4 - core index']
  #allocation1 [shape = 'u32[72,128]{1,0:T(1,128)}', space=vmem, size = 0x9000, scoped, tag = 'internal scratch']
  #allocation2 [shape = 'f32[4,16]{1,0:T(4,128)}', space=vmem, size = 0x800, scoped, tag = 'scratch operand']
  %s0 = inlined_call_operand.hbm [shape: bf16[2,18,4,18], index: 0, kind: input, shape index: {}]
  %s1 = inlined_call_operand.vmem [shape: bf16[9,4,4], index: 1, kind: input, shape index: {}]
  %s2 = inlined_call_operand.vmem [shape: f32[8,4], index: 2, kind: input, shape index: {}]
  %s3 = inlined_call_operand.vmem [shape: f32[8,1], index: 3, kind: input, shape index: {}]
  %s4 = inlined_call_operand.hbm [shape: f32[2,16,8,16], index: 4, kind: output, shape index: {}]
  %s5 = sld [smem:[#allocation0]]
  $region61: #{tpu_custom_call.1} parent=0
    _
  %s7 = ssub.s32 1, %s5
  %s8 = scalar_select 0, %s7, %s5
  $region1: #{tpu_custom_call.1} parent=0
    #allocation3 [shape = 'u8[2048]{0}', space=vmem, size = 0x800, scoped, tag = 'input window, operand 0']
    #allocation4 [shape = 's32[2]{0}', space=sflag, size = 0x8, scoped, tag = 'scoped memory for tpu_custom_call.1']
    #allocation5 [shape = 's32[2]{0}', space=sflag, size = 0x8, scoped, tag = 'scoped memory for tpu_custom_call.1']
    #allocation6 [shape = 'u8[8192]{0}', space=vmem, size = 0x2000, scoped, tag = 'output window, operand 0']
    %9 = vsyncpa [#allocation4], 0
    %s10 = scalar_lea.sflag [#allocation4], 1
    %11 = vsyncpa %s10, 0
    %12 = vsyncpa [#allocation5], 0
    %s13 = scalar_lea.sflag [#allocation5], 1
    %14 = vsyncpa %s13, 0
    loop: start=0, step=1, limit=98
    $region2: #{tpu_custom_call.1} parent=1 // loop_pre_header
      _
    $region3: #{tpu_custom_call.1} parent=1 // loop_header
      %s16 = sphi 0, %s20
      %p17 = scmp.ge.s32.totalorder %s16, 98
      %s23 = sphi 0, %s42
      %s24 = sphi 0, %s38
      %s25 = sphi 0, %s34
      %s26 = sphi 0, %s23
      %s27 = sphi 0, %s24
      %s28 = sphi 0, %s25
      %s29 = sphi 0, %s26
      %s30 = sphi 0, %s27
      %s31 = sphi 0, %s28
      %s49 = sphi 0, %s51
      %s52 = sphi 0, %s49
      %s53 = sphi 0, %s52
      %s69 = sphi 0, %s53
      %s73 = sphi 0, %s73
      %s75 = sphi 0, %s73
      %s76 = sphi 0, %s75
      %s90 = sphi 0, %s76
      %s94 = sphi 0, %s94
      %s96 = sphi 0, %s94
      %s97 = sphi 0, %s96
      %s111 = sphi 0, %s97
      %s115 = sphi 0, %s115
      %s117 = sphi 0, %s115
      %s118 = sphi 0, %s117
      %s132 = sphi 0, %s118
      %s140 = sphi 0, %s142
      %s143 = sphi 0, %s140
      %s144 = sphi 0, %s143
      %s160 = sphi 0, %s144
    $region4: #{tpu_custom_call.1} parent=1 // loop_header_branch
      %19 = sbr.rel (%p17) target = $region8
    $region5: #{tpu_custom_call.1} parent=1 // loop_body
      %s21 = ssub.s32 %s16, 1
      %s22 = ssub.s32 %s16, 2
      %s32 = sadd.s32 1, %s25
      %p33 = scmp.ge.s32.totalorder %s32, 3
      %s34 = scalar_select %p33, 0, %s32
      %s35 = sadd.s32 1, %s24
      %s36 = scalar_select %p33, %s35, %s24
      %p37 = scmp.ge.s32.totalorder %s36, 16
      %s38 = scalar_select %p37, 0, %s36
      %s39 = sadd.s32 1, %s23
      %s40 = scalar_select %p37, %s39, %s23
      %p41 = scmp.ge.s32.totalorder %s40, 2
      %s42 = scalar_select %p41, 0, %s40
      %s43 = sadd.s32 %s24, %s25
      %s44 = sadd.s32 %s38, %s34
      %s45 = ssub.s32 %s23, %s42
      %s46 = ssub.s32 %s43, %s44
      %s47 = sor.u32 %s45, %s46
      %p48 = scmp.eq.s32.totalorder %s47, 0
      %s50 = sadd.s32 %s49, 1
      %s51 = scalar_select %p48, %s49, %s50
      %p54 = pneg %p48
      %p55 = scmp.eq.s32.totalorder %s16, 95
      %p56 = por %p54, %p55
      %p57 = scmp.ne.s32.totalorder %s49, %s52
      %p58 = scmp.eq.s32.totalorder %s16, 0
      %p59 = por %p57, %p58
      %p60 = scmp.ne.s32.totalorder %s49, %s52
      %p61 = scmp.eq.s32.totalorder %s21, 95
      %p62 = por %p60, %p61
      %p63 = scmp.ne.s32.totalorder %s52, %s53
      %p64 = scmp.eq.s32.totalorder %s21, 0
      %p65 = por %p63, %p64
      %p66 = scmp.ne.s32.totalorder %s52, %s53
      %p67 = scmp.eq.s32.totalorder %s22, 95
      %p68 = por %p66, %p67
      %p70 = scmp.ne.s32.totalorder %s53, %s69
      %p71 = scmp.eq.s32.totalorder %s22, 0
      %p72 = por %p70, %p71
      %s74 = sadd.s32 %s73, 1
      %p77 = scmp.eq.s32.totalorder %s16, 95
      %p78 = scmp.ne.s32.totalorder %s73, %s75
      %p79 = scmp.eq.s32.totalorder %s16, 0
      %p80 = por %p78, %p79
      %p81 = scmp.ne.s32.totalorder %s73, %s75
      %p82 = scmp.eq.s32.totalorder %s21, 95
      %p83 = por %p81, %p82
      %p84 = scmp.ne.s32.totalorder %s75, %s76
      %p85 = scmp.eq.s32.totalorder %s21, 0
      %p86 = por %p84, %p85
      %p87 = scmp.ne.s32.totalorder %s75, %s76
      %p88 = scmp.eq.s32.totalorder %s22, 95
      %p89 = por %p87, %p88
      %p91 = scmp.ne.s32.totalorder %s76, %s90
      %p92 = scmp.eq.s32.totalorder %s22, 0
      %p93 = por %p91, %p92
      %s95 = sadd.s32 %s94, 1
      %p98 = scmp.eq.s32.totalorder %s16, 95
      %p99 = scmp.ne.s32.totalorder %s94, %s96
      %p100 = scmp.eq.s32.totalorder %s16, 0
      %p101 = por %p99, %p100
      %p102 = scmp.ne.s32.totalorder %s94, %s96
      %p103 = scmp.eq.s32.totalorder %s21, 95
      %p104 = por %p102, %p103
      %p105 = scmp.ne.s32.totalorder %s96, %s97
      %p106 = scmp.eq.s32.totalorder %s21, 0
      %p107 = por %p105, %p106
      %p108 = scmp.ne.s32.totalorder %s96, %s97
      %p109 = scmp.eq.s32.totalorder %s22, 95
      %p110 = por %p108, %p109
      %p112 = scmp.ne.s32.totalorder %s97, %s111
      %p113 = scmp.eq.s32.totalorder %s22, 0
      %p114 = por %p112, %p113
      %s116 = sadd.s32 %s115, 1
      %p119 = scmp.eq.s32.totalorder %s16, 95
      %p120 = scmp.ne.s32.totalorder %s115, %s117
      %p121 = scmp.eq.s32.totalorder %s16, 0
      %p122 = por %p120, %p121
      %p123 = scmp.ne.s32.totalorder %s115, %s117
      %p124 = scmp.eq.s32.totalorder %s21, 95
      %p125 = por %p123, %p124
      %p126 = scmp.ne.s32.totalorder %s117, %s118
      %p127 = scmp.eq.s32.totalorder %s21, 0
      %p128 = por %p126, %p127
      %p129 = scmp.ne.s32.totalorder %s117, %s118
      %p130 = scmp.eq.s32.totalorder %s22, 95
      %p131 = por %p129, %p130
      %p133 = scmp.ne.s32.totalorder %s118, %s132
      %p134 = scmp.eq.s32.totalorder %s22, 0
      %p135 = por %p133, %p134
      %s136 = ssub.s32 %s23, %s42
      %s137 = ssub.s32 %s24, %s38
      %s138 = sor.u32 %s136, %s137
      %p139 = scmp.eq.s32.totalorder %s138, 0
      %s141 = sadd.s32 %s140, 1
      %s142 = scalar_select %p139, %s140, %s141
      %p145 = pneg %p139
      %p146 = scmp.eq.s32.totalorder %s16, 95
      %p147 = por %p145, %p146
      %p148 = scmp.ne.s32.totalorder %s140, %s143
      %p149 = scmp.eq.s32.totalorder %s16, 0
      %p150 = por %p148, %p149
      %p151 = scmp.ne.s32.totalorder %s140, %s143
      %p152 = scmp.eq.s32.totalorder %s21, 95
      %p153 = por %p151, %p152
      %p154 = scmp.ne.s32.totalorder %s143, %s144
      %p155 = scmp.eq.s32.totalorder %s21, 0
      %p156 = por %p154, %p155
      %p157 = scmp.ne.s32.totalorder %s143, %s144
      %p158 = scmp.eq.s32.totalorder %s22, 95
      %p159 = por %p157, %p158
      %p161 = scmp.ne.s32.totalorder %s144, %s160
      %p162 = scmp.eq.s32.totalorder %s22, 0
      %p163 = por %p161, %p162
      %p164 = scmp.le.s32.totalorder 1, %s16
      %p165 = scmp.lt.s32.totalorder %s16, 97
      %p166 = pnand %p164, %p165
      %p167 = pneg %p166
      // Predicated region
      $region9: #{tpu_custom_call.1} parent=5 // pred_check
        _
      $region10: #{tpu_custom_call.1} parent=5 // pred_check_branch
        %169 = sbr.rel (%p166) target = $region12
      $region11: #{tpu_custom_call.1} parent=5 // pred_region
        %s170 = ssub.s32 %s16, 1
        // Predicated region
        $region13: #{tpu_custom_call.1} parent=11 // pred_check
          %p171 = pneg %p86
        $region14: #{tpu_custom_call.1} parent=11 // pred_check_branch
          %173 = sbr.rel (%p171) target = $region16
        $region15: #{tpu_custom_call.1} parent=11 // pred_region
          _
        $region16: #{tpu_custom_call.1} parent=11 // pred_fallthru
          _
        // Predicated region
        $region17: #{tpu_custom_call.1} parent=11 // pred_check
          %p174 = pneg %p107
        $region18: #{tpu_custom_call.1} parent=11 // pred_check_branch
          %176 = sbr.rel (%p174) target = $region20
        $region19: #{tpu_custom_call.1} parent=11 // pred_region
          _
        $region20: #{tpu_custom_call.1} parent=11 // pred_fallthru
          _
        // Predicated region
        $region21: #{tpu_custom_call.1} parent=11 // pred_check
          %p177 = pneg %p128
        $region22: #{tpu_custom_call.1} parent=11 // pred_check_branch
          %179 = sbr.rel (%p177) target = $region24
        $region23: #{tpu_custom_call.1} parent=11 // pred_region
          _
        $region24: #{tpu_custom_call.1} parent=11 // pred_fallthru
          _
      $region12: #{tpu_custom_call.1} parent=5 // pred_fallthru
        _
      %p180 = scmp.lt.s32.totalorder %s16, 96
      // Predicated region
      $region25: #{tpu_custom_call.1} parent=5 // pred_check
        %p181 = pneg %p180
      $region26: #{tpu_custom_call.1} parent=5 // pred_check_branch
        %183 = sbr.rel (%p181) target = $region28
      $region27: #{tpu_custom_call.1} parent=5 // pred_region
        // Predicated region
        $region29: #{tpu_custom_call.1} parent=27 // pred_check
          %p184 = pneg %p59
        $region30: #{tpu_custom_call.1} parent=27 // pred_check_branch
          %186 = sbr.rel (%p184) target = $region32
        $region31: #{tpu_custom_call.1} parent=27 // pred_region
          %s187 = sand.u32 %s49, 1
          %s188 = scalar_lea.sflag [#allocation4], %s187
          %s189 = sand.u32 %s49, 1
          %s190 = smul.addr %s189, 2
          %s191 = scalar_lea.vmem [#allocation3], %s190
          %s192 = sadd.s32 %s24, %s25
          %194 = vsyncadd %s188, 0
          %s195 = smul.addr %s23, 18
          %s196 = sadd.s32 %s192, %s195
          %s197 = smul.addr %s196, 2
          %s198 = scalar_lea.hbm %s0, %s197
          %s200 = sshll.u32 %s198, 4
          %s201 = int_to_ptr.hbm [resolvable:$true] %s200
          %s202 = sshll.u32 %s191, 4
          %s203 = int_to_ptr.vmem [resolvable:$true] %s202
          %205 = dma.hbm_to_vmem [thread:$0]  %s201, 32, %s203, %s188
        $region32: #{tpu_custom_call.1} parent=27 // pred_fallthru
          _
      $region28: #{tpu_custom_call.1} parent=5 // pred_fallthru
        _
      %p206 = scmp.le.s32.totalorder 1, %s16
      %p207 = scmp.lt.s32.totalorder %s16, 97
      %p208 = pnand %p206, %p207
      %p209 = pneg %p208
      // Predicated region
      $region33: #{tpu_custom_call.1} parent=5 // pred_check
        _
      $region34: #{tpu_custom_call.1} parent=5 // pred_check_branch
        %211 = sbr.rel (%p208) target = $region36
      $region35: #{tpu_custom_call.1} parent=5 // pred_region
        %s212 = ssub.s32 %s16, 1
        %s213 = sand.u32 %s52, 1
        %s214 = scalar_lea.sflag [#allocation4], %s213
        %s215 = sand.u32 %s52, 1
        %s216 = smul.addr %s215, 2
        %s217 = scalar_lea.vmem [#allocation3], %s216
        // Predicated region
        $region37: #{tpu_custom_call.1} parent=35 // pred_check
          %p218 = pneg %p65
        $region38: #{tpu_custom_call.1} parent=35 // pred_check_branch
          %220 = sbr.rel (%p218) target = $region40
        $region39: #{tpu_custom_call.1} parent=35 // pred_region
          %222 = dma.done %s214, 32
        $region40: #{tpu_custom_call.1} parent=35 // pred_fallthru
          _
        %s223 = sand.u32 %s52, 1
        %s224 = scalar_lea.sflag [#allocation4], %s223
        %s225 = sand.u32 %s52, 1
        %s226 = smul.addr %s225, 2
        %s227 = scalar_lea.vmem [#allocation3], %s226
        %p228 = pneg %p65
        %p229 = pneg %p62
        %p230 = pneg %p86
        %p231 = pneg %p83
        %p232 = pneg %p107
        %p233 = pneg %p104
        %p234 = pneg %p128
        %p235 = pneg %p125
        %p236 = pneg %p156
        %p237 = pneg %p153
        %s238 = sand.u32 %s143, 1
        %s239 = scalar_lea.sflag [#allocation5], %s238
        %s240 = sand.u32 %s143, 1
        %s241 = smul.addr %s240, 8
        %s242 = scalar_lea.vmem [#allocation6], %s241
        %s243 = sadd.s32 %s27, %s28
        %p245 = scmp.eq.s32.totalorder %s28, 0
        // Predicated region
        $region41: #{tpu_custom_call.1} parent=35 // pred_check
          %p246 = pneg %p245
        $region42: #{tpu_custom_call.1} parent=35 // pred_check_branch
          %248 = sbr.rel (%p246) target = $region44
        $region43: #{tpu_custom_call.1} parent=35 // pred_region
          %vm249 = vcmask 125952
          %250 = vst.msk [vmem:[#allocation2] sm:$0xf] %vm249, 0.0
        $region44: #{tpu_custom_call.1} parent=35 // pred_fallthru
          _
        %v251 = vld [vmem:[%s217] sm:$0x3]
        %v252 = vld [vmem:[#allocation2] sm:$0xf]
        %s253 = smul.u32 %s28, 3
        %s254 = smul.addr %s253, 2
        %s255 = scalar_lea.vmem %s1, %s254
        %v256 = vld [vmem:[%s255] sm:$0x3]
        %vm257 = vcmask 31744
        %v259 = vsel %vm257, %v256, 0
        %vm261 = vcmask 1041408
        %v263 = vsel %vm261, %v251, 0
        %265 = vmatpush.bf16.msra.mxu0 0
        %266 = vmatpush.bf16.msra.mxu0 0
        %267 = vmatpush.bf16.msra.mxu0 0
        %268 = vmatpush.bf16.msra.mxu0 0
        %269 = vmatpush.bf16.msra.mxu0 0
        %270 = vmatpush.bf16.msra.mxu0 0
        %271 = vmatpush.bf16.msra.mxu0 0
        %272 = vmatpush.bf16.msra.mxu0 %v263
        %273 = vmatmul.bf16.gmra.mxu0 %v259
        %v274 = vpop.f32.mrf.mxu0
        %v275 = vadd.f32 0.0, %v274
        %v276 = vpop.f32.mrf.mxu0
        %277 = vdwg.mxu0
        %v278 = vadd.f32 %v252, %v275
        %vm279 = vcmask 125952
        %280 = vst.msk [vmem:[#allocation2] sm:$0xf] %vm279, %v278
        %v281 = vld [vmem:[%s217] sm:$0x3]
        %v282 = vld [vmem:[#allocation2] sm:$0xf]
        %s283 = sadd.s32 %s253, 1
        %s284 = smul.addr %s283, 2
        %s285 = scalar_lea.vmem %s1, %s284
        %v286 = vld [vmem:[%s285] sm:$0x3]
        %288 = vst [vmem:[#allocation1] ss:$4 sm:$0xff] %v281
        %v289 = vld.sshfl [vmem:[#allocation1] sm:$0xff pattern:$0x73625140]
        %291 = vrot.lane.b32.xlu0 %v289, 127
        %v292 = vpop.permute.xlu0 %291
        %v294 = vsel %vm257, %v286, 0
        %v297 = vsel %vm261, %v292, 0
        %299 = vmatpush.bf16.msra.mxu0 0
        %300 = vmatpush.bf16.msra.mxu0 0
        %301 = vmatpush.bf16.msra.mxu0 0
        %302 = vmatpush.bf16.msra.mxu0 0
        %303 = vmatpush.bf16.msra.mxu0 0
        %304 = vmatpush.bf16.msra.mxu0 0
        %305 = vmatpush.bf16.msra.mxu0 0
        %306 = vmatpush.bf16.msra.mxu0 %v297
        %307 = vmatmul.bf16.gmra.mxu0 %v294
        %v308 = vpop.f32.mrf.mxu0
        %v309 = vadd.f32 0.0, %v308
        %v310 = vpop.f32.mrf.mxu0
        %311 = vdwg.mxu0
        %v312 = vadd.f32 %v282, %v309
        %313 = vst.msk [vmem:[#allocation2] sm:$0xf] %vm279, %v312
        %v314 = vld [vmem:[%s217] sm:$0x3]
        %v315 = vld [vmem:[#allocation2] sm:$0xf]
        %s316 = sadd.s32 %s253, 2
        %s317 = smul.addr %s316, 2
        %s318 = scalar_lea.vmem %s1, %s317
        %v319 = vld [vmem:[%s318] sm:$0x3]
        %321 = vst [vmem:[#allocation1] ss:$4 sm:$0xff] %v314
        %v322 = vld.sshfl [vmem:[#allocation1] sm:$0xff pattern:$0x73625140]
        %324 = vrot.lane.b32.xlu0 %v322, 126
        %v325 = vpop.permute.xlu0 %324
        %v327 = vsel %vm257, %v319, 0
        %v330 = vsel %vm261, %v325, 0
        %332 = vmatpush.bf16.msra.mxu0 0
        %333 = vmatpush.bf16.msra.mxu0 0
        %334 = vmatpush.bf16.msra.mxu0 0
        %335 = vmatpush.bf16.msra.mxu0 0
        %336 = vmatpush.bf16.msra.mxu0 0
        %337 = vmatpush.bf16.msra.mxu0 0
        %338 = vmatpush.bf16.msra.mxu0 0
        %339 = vmatpush.bf16.msra.mxu0 %v330
        %340 = vmatmul.bf16.gmra.mxu0 %v327
        %v341 = vpop.f32.mrf.mxu0
        %v342 = vadd.f32 0.0, %v341
        %v343 = vpop.f32.mrf.mxu0
        %344 = vdwg.mxu0
        %v345 = vadd.f32 %v315, %v342
        %346 = vst.msk [vmem:[#allocation2] sm:$0xf] %vm279, %v345
        %p347 = scmp.eq.s32.totalorder %s28, 2
        // Predicated region
        $region45: #{tpu_custom_call.1} parent=35 // pred_check
          %p348 = pneg %p347
        $region46: #{tpu_custom_call.1} parent=35 // pred_check_branch
          %350 = sbr.rel (%p348) target = $region48
        $region47: #{tpu_custom_call.1} parent=35 // pred_region
          %v351 = vld [vmem:[%s2] sm:$0xff]
          %v352 = vld [vmem:[#allocation2] sm:$0xf]
          %v353 = vld [vmem:[%s3] sm:$0xff]
          %355 = vset.pattern.permute.xlu0 0
          %356 = vperm.xlu0 %355, %v353
          %v357 = vpop.permute.xlu0 %356
          %v360 = vsel %vm257, %v351, 0
          %vm362 = vcmask 1043456
          %v364 = vsel %vm362, %v352, 0
          %366 = vmatpush.msra.mxu0 0.0
          %367 = vmatpush.msra.mxu0 0.0
          %368 = vmatpush.msra.mxu0 0.0
          %369 = vmatpush.msra.mxu0 0.0
          %370 = vmatpush.msra.mxu0 0.0
          %371 = vmatpush.msra.mxu0 0.0
          %372 = vmatpush.msra.mxu0 0.0
          %373 = vmatpush.msra.mxu0 0.0
          %374 = vmatpush.msra.mxu0 0.0
          %375 = vmatpush.msra.mxu0 0.0
          %376 = vmatpush.msra.mxu0 0.0
          %377 = vmatpush.msra.mxu0 0.0
          %378 = vmatpush.msra.mxu0 0.0
          %379 = vmatpush.msra.mxu0 0.0
          %380 = vmatpush.msra.mxu0 0.0
          %v381 = vand.u32 %v364, 4294901760
          %382 = vmatpush.msra.mxu0 %v381
          %v383 = vand.u32 %v360, 4294901760
          %v384 = vsub.f32 %v360, %v383
          %v385 = vand.u32 %v384, 4294901760
          %v386 = vsub.f32 %v384, %v385
          %v387 = vand.u32 %v386, 4294901760
          %388 = vmatmul.f32.gmra.mxu0 %v387
          %v389 = vpop.f32.mrf.mxu0
          %v390 = vadd.f32 %v357, %v389
          %391 = vdwg.mxu0
          %392 = vmatpush.msra.mxu0 0.0
          %393 = vmatpush.msra.mxu0 0.0
          %394 = vmatpush.msra.mxu0 0.0
          %395 = vmatpush.msra.mxu0 0.0
          %396 = vmatpush.msra.mxu0 0.0
          %397 = vmatpush.msra.mxu0 0.0
          %398 = vmatpush.msra.mxu0 0.0
          %399 = vmatpush.msra.mxu0 0.0
          %400 = vmatpush.msra.mxu0 0.0
          %401 = vmatpush.msra.mxu0 0.0
          %402 = vmatpush.msra.mxu0 0.0
          %403 = vmatpush.msra.mxu0 0.0
          %404 = vmatpush.msra.mxu0 0.0
          %405 = vmatpush.msra.mxu0 0.0
          %406 = vmatpush.msra.mxu0 0.0
          %v407 = vand.u32 %v364, 4294901760
          %v408 = vsub.f32 %v364, %v407
          %v409 = vand.u32 %v408, 4294901760
          %v410 = vsub.f32 %v408, %v409
          %v411 = vand.u32 %v410, 4294901760
          %412 = vmatpush.msra.mxu0 %v411
          %v413 = vand.u32 %v360, 4294901760
          %414 = vmatmul.f32.gmra.mxu0 %v413
          %v415 = vpop.f32.mrf.mxu0
          %v416 = vadd.f32 %v390, %v415
          %417 = vdwg.mxu0
          %418 = vmatpush.msra.mxu0 0.0
          %419 = vmatpush.msra.mxu0 0.0
          %420 = vmatpush.msra.mxu0 0.0
          %421 = vmatpush.msra.mxu0 0.0
          %422 = vmatpush.msra.mxu0 0.0
          %423 = vmatpush.msra.mxu0 0.0
          %424 = vmatpush.msra.mxu0 0.0
          %425 = vmatpush.msra.mxu0 0.0
          %426 = vmatpush.msra.mxu0 0.0
          %427 = vmatpush.msra.mxu0 0.0
          %428 = vmatpush.msra.mxu0 0.0
          %429 = vmatpush.msra.mxu0 0.0
          %430 = vmatpush.msra.mxu0 0.0
          %431 = vmatpush.msra.mxu0 0.0
          %432 = vmatpush.msra.mxu0 0.0
          %v433 = vand.u32 %v364, 4294901760
          %v434 = vsub.f32 %v364, %v433
          %435 = vmatpush.msra.mxu0 %v434
          %v436 = vand.u32 %v360, 4294901760
          %v437 = vsub.f32 %v360, %v436
          %438 = vmatmul.f32.gmra.mxu0 %v437
          %v439 = vpop.f32.mrf.mxu0
          %v440 = vadd.f32 %v416, %v439
          %441 = vdwg.mxu0
          %442 = vmatpush.msra.mxu0 0.0
          %443 = vmatpush.msra.mxu0 0.0
          %444 = vmatpush.msra.mxu0 0.0
          %445 = vmatpush.msra.mxu0 0.0
          %446 = vmatpush.msra.mxu0 0.0
          %447 = vmatpush.msra.mxu0 0.0
          %448 = vmatpush.msra.mxu0 0.0
          %449 = vmatpush.msra.mxu0 0.0
          %450 = vmatpush.msra.mxu0 0.0
          %451 = vmatpush.msra.mxu0 0.0
          %452 = vmatpush.msra.mxu0 0.0
          %453 = vmatpush.msra.mxu0 0.0
          %454 = vmatpush.msra.mxu0 0.0
          %455 = vmatpush.msra.mxu0 0.0
          %456 = vmatpush.msra.mxu0 0.0
          %v457 = vand.u32 %v364, 4294901760
          %458 = vmatpush.msra.mxu0 %v457
          %v459 = vand.u32 %v360, 4294901760
          %v460 = vsub.f32 %v360, %v459
          %v461 = vand.u32 %v460, 4294901760
          %462 = vmatmul.f32.gmra.mxu0 %v461
          %v463 = vpop.f32.mrf.mxu0
          %v464 = vadd.f32 %v440, %v463
          %465 = vdwg.mxu0
          %466 = vmatpush.msra.mxu0 0.0
          %467 = vmatpush.msra.mxu0 0.0
          %468 = vmatpush.msra.mxu0 0.0
          %469 = vmatpush.msra.mxu0 0.0
          %470 = vmatpush.msra.mxu0 0.0
          %471 = vmatpush.msra.mxu0 0.0
          %472 = vmatpush.msra.mxu0 0.0
          %473 = vmatpush.msra.mxu0 0.0
          %474 = vmatpush.msra.mxu0 0.0
          %475 = vmatpush.msra.mxu0 0.0
          %476 = vmatpush.msra.mxu0 0.0
          %477 = vmatpush.msra.mxu0 0.0
          %478 = vmatpush.msra.mxu0 0.0
          %479 = vmatpush.msra.mxu0 0.0
          %480 = vmatpush.msra.mxu0 0.0
          %v481 = vand.u32 %v364, 4294901760
          %v482 = vsub.f32 %v364, %v481
          %v483 = vand.u32 %v482, 4294901760
          %484 = vmatpush.msra.mxu0 %v483
          %v485 = vand.u32 %v360, 4294901760
          %486 = vmatmul.f32.gmra.mxu0 %v485
          %v487 = vpop.f32.mrf.mxu0
          %v488 = vadd.f32 %v464, %v487
          %489 = vdwg.mxu0
          %490 = vmatpush.msra.mxu0 0.0
          %491 = vmatpush.msra.mxu0 0.0
          %492 = vmatpush.msra.mxu0 0.0
          %493 = vmatpush.msra.mxu0 0.0
          %494 = vmatpush.msra.mxu0 0.0
          %495 = vmatpush.msra.mxu0 0.0
          %496 = vmatpush.msra.mxu0 0.0
          %497 = vmatpush.msra.mxu0 0.0
          %498 = vmatpush.msra.mxu0 0.0
          %499 = vmatpush.msra.mxu0 0.0
          %500 = vmatpush.msra.mxu0 0.0
          %501 = vmatpush.msra.mxu0 0.0
          %502 = vmatpush.msra.mxu0 0.0
          %503 = vmatpush.msra.mxu0 0.0
          %504 = vmatpush.msra.mxu0 0.0
          %v505 = vand.u32 %v364, 4294901760
          %506 = vmatpush.msra.mxu0 %v505
          %v507 = vand.u32 %v360, 4294901760
          %508 = vmatmul.f32.gmra.mxu0 %v507
          %v509 = vpop.f32.mrf.mxu0
          %v510 = vadd.f32 %v488, %v509
          %511 = vdwg.mxu0
          %vm512 = vcmask 130048
          %513 = vst.msk [vmem:[%s242] sm:$0xff] %vm512, %v510
        $region48: #{tpu_custom_call.1} parent=35 // pred_fallthru
          _
        %s514 = sand.u32 %s143, 1
        %s515 = scalar_lea.sflag [#allocation5], %s514
        %s516 = sand.u32 %s143, 1
        %s517 = smul.addr %s516, 8
        %s518 = scalar_lea.vmem [#allocation6], %s517
        // Predicated region
        $region49: #{tpu_custom_call.1} parent=35 // pred_check
          %p519 = pneg %p153
        $region50: #{tpu_custom_call.1} parent=35 // pred_check_branch
          %521 = sbr.rel (%p519) target = $region52
        $region51: #{tpu_custom_call.1} parent=35 // pred_region
          %523 = vsyncadd %s515, 0
          %s524 = smul.addr %s26, 16
          %s525 = sadd.s32 %s27, %s524
          %s526 = smul.addr %s525, 8
          %s527 = scalar_lea.hbm %s4, %s526
          %s529 = sshll.u32 %s518, 4
          %s530 = int_to_ptr.vmem [resolvable:$true] %s529
          %s531 = sshll.u32 %s527, 4
          %s532 = int_to_ptr.hbm [resolvable:$true] %s531
          %534 = dma.vmem_to_hbm [thread:$0]  %s530, 128, %s532, %s515
        $region52: #{tpu_custom_call.1} parent=35 // pred_fallthru
          _
      $region36: #{tpu_custom_call.1} parent=5 // pred_fallthru
        _
      %p535 = scmp.le.s32.totalorder 2, %s16
      // Predicated region
      $region53: #{tpu_custom_call.1} parent=5 // pred_check
        %p536 = pneg %p535
      $region54: #{tpu_custom_call.1} parent=5 // pred_check_branch
        %538 = sbr.rel (%p536) target = $region56
      $region55: #{tpu_custom_call.1} parent=5 // pred_region
        %s539 = ssub.s32 %s16, 2
        // Predicated region
        $region57: #{tpu_custom_call.1} parent=55 // pred_check
          %p540 = pneg %p159
        $region58: #{tpu_custom_call.1} parent=55 // pred_check_branch
          %542 = sbr.rel (%p540) target = $region60
        $region59: #{tpu_custom_call.1} parent=55 // pred_region
          %s543 = sand.u32 %s144, 1
          %s544 = scalar_lea.sflag [#allocation5], %s543
          %s545 = sand.u32 %s144, 1
          %s546 = smul.addr %s545, 8
          %s547 = scalar_lea.vmem [#allocation6], %s546
          %549 = dma.done %s544, 128
        $region60: #{tpu_custom_call.1} parent=55 // pred_fallthru
          _
      $region56: #{tpu_custom_call.1} parent=5 // pred_fallthru
        _
    $region6: #{tpu_custom_call.1} parent=1 // loop_footer
      %s20 = sadd.s32 1, %s16
    $region7: #{tpu_custom_call.1} parent=1 // loop_footer_branch
      %15 = sbr.rel target = $region3
    $region8: #{tpu_custom_call.1} parent=1 // loop_exit
      _
    %550 = vsyncpa [#allocation4], 1
    %s551 = scalar_lea.sflag [#allocation4], 1
    %552 = vsyncpa %s551, 1
    %553 = vsyncpa [#allocation5], 1
    %s554 = scalar_lea.sflag [#allocation5], 1
    %555 = vsyncpa %s554, 1

</llo_original>
